<compile_context>
chip_gen: v7x
topology: tpu7x:2x2x1
jax: 0.10.0
libtpu: 0.0.40
codegen_flags: <defaults>
</compile_context>

<pallas_src>
import functools

import jax
import jax.numpy as jnp
from jax.experimental import pallas as pl
from jax.experimental.pallas import tpu as pltpu

BN_EPS = 1e-5


def _round_up(n, m):
    return ((n + m - 1) // m) * m


def _mlp_head_kernel(x_ref,
                     w1_ref, b1_ref,
                     w2_ref, b2_ref,
                     w3_ref, b3_ref,
                     w4_ref, b4_ref,
                     out_ref):
    """Fused (fc + folded-BN + relu) x3 + final fc.  Weights VMEM-resident."""

    def fc_relu(h, w_ref, b_ref):
        # bf16 x bf16 MXU matmul with f32 accumulation; bias-add / ReLU
        # epilogue in f32 (v5e VPU has no bf16 path), then back to bf16 for
        # the next MXU op.  Dropout is identity in eval mode.
        z = jnp.dot(h, w_ref[...], preferred_element_type=jnp.float32) + b_ref[...]
        return jnp.maximum(z, 0.0).astype(w_ref.dtype)

    h = fc_relu(x_ref[...], w1_ref, b1_ref)          # (TB, 256)  x is bf16 already
    h = fc_relu(h, w2_ref, b2_ref)                   # (TB, 128)
    h = fc_relu(h, w3_ref, b3_ref)                   # (TB, H3p=128)

    logits = jnp.dot(h, w4_ref[...],
                     preferred_element_type=jnp.float32) + b4_ref[...]
    out_ref[...] = logits.astype(out_ref.dtype)      # lane-dense bf16 store


def prepare_params(params, feature_dim, num_classes=3,
                   weights_dtype=jnp.bfloat16):
    """Fold eval-mode BN into the Linears and pad all dims to lane multiples."""
    Dp = _round_up(feature_dim, 128)
    H3p = 128                                   # pad the 64-wide layer to 128
    NCp = _round_up(num_classes, 128)           # lane-dense logits

    def fold(w, b, g, be, rm, rv):
        scale = g * jax.lax.rsqrt(rv + BN_EPS)  # (1, d_out)
        return w * scale, (b - rm) * scale + be

    w1, b1 = fold(params["w1"], params["b1"], params["g1"], params["be1"],
                  params["rm1"], params["rv1"])
    w2, b2 = fold(params["w2"], params["b2"], params["g2"], params["be2"],
                  params["rm2"], params["rv2"])
    w3, b3 = fold(params["w3"], params["b3"], params["g3"], params["be3"],
                  params["rm3"], params["rv3"])
    w4, b4 = params["w4"], params["b4"]

    # Zero-pad to lane-aligned shapes.  Padded output lanes of layer 3 get
    # zero weight + zero bias -> relu(0)=0, and w4's padded input rows are
    # zero, so padding never changes the real logits.
    w1 = jnp.pad(w1, ((0, Dp - w1.shape[0]), (0, 0)))
    w3 = jnp.pad(w3, ((0, 0), (0, H3p - w3.shape[1])))
    b3 = jnp.pad(b3, ((0, 0), (0, H3p - b3.shape[1])))
    w4 = jnp.pad(w4, ((0, H3p - w4.shape[0]), (0, NCp - w4.shape[1])))
    b4 = jnp.pad(b4, ((0, 0), (0, NCp - b4.shape[1])))

    dt = weights_dtype
    f32 = jnp.float32
    return {
        "w1": w1.astype(dt), "b1": b1.astype(f32),
        "w2": w2.astype(dt), "b2": b2.astype(f32),
        "w3": w3.astype(dt), "b3": b3.astype(f32),
        "w4": w4.astype(dt), "b4": b4.astype(f32),
    }


def _batch_tiling(B, max_tb=512):
    """Pick (TB, Bp): TB multiple of 8 sublanes, Bp = TB * nsteps >= B with
    minimal padding, and >= 2 grid steps whenever B > 8 so the "parallel"
    batch axis can shard across both TensorCores on v7x."""
    B8 = _round_up(max(B, 1), 8)
    if B8 <= 8:
        return B8, B8                            # single tiny tile
    nsteps = max(2, -(-B8 // max_tb))            # at least 2 steps
    TB = _round_up(-(-B8 // nsteps), 8)
    nsteps = -(-B8 // TB)
    return TB, TB * nsteps


@functools.partial(jax.jit, static_argnames=("num_classes",))
def multi_model_head(x, prep, num_classes=3):
    """x: (B, D) CLS features (any float dtype).  prep: prepare_params()."""
    B, D = x.shape
    Dp = prep["w1"].shape[0]
    H1 = prep["w1"].shape[1]
    H2 = prep["w2"].shape[1]
    H3p = prep["w3"].shape[1]
    NCp = prep["w4"].shape[1]

    TB, Bp = _batch_tiling(B)
    pad_b, pad_d = Bp - B, Dp - D

    # bf16 x halves the dominant HBM stream.  Skip the pad when shapes are
    # already aligned (common ViT case); otherwise fuse pad + cast into one
    # materialization of x.
    if pad_b or pad_d:
        x_p = jnp.pad(x, ((0, pad_b), (0, pad_d))).astype(jnp.bfloat16)
    else:
        x_p = x.astype(jnp.bfloat16)

    grid = (Bp // TB,)

    def resident(shape):  # weights/biases: same block for every grid step
        return pl.BlockSpec(shape, lambda i: (0, 0))

    # Advisory cost estimate so XLA schedules the surrounding graph sensibly.
    flops = 2 * Bp * (Dp * H1 + H1 * H2 + H2 * H3p + H3p * NCp)
    param_bytes = sum(int(prep[k].size) * prep[k].dtype.itemsize for k in prep)
    bytes_accessed = Bp * Dp * 2 + Bp * NCp * 2 + param_bytes
    cost = pl.CostEstimate(flops=flops, transcendentals=0,
                           bytes_accessed=bytes_accessed)

    out_p = pl.pallas_call(
        _mlp_head_kernel,
        out_shape=jax.ShapeDtypeStruct((Bp, NCp), jnp.bfloat16),
        grid_spec=pltpu.PrefetchScalarGridSpec(
            num_scalar_prefetch=0,
            grid=grid,
            in_specs=[
                pl.BlockSpec((TB, Dp), lambda i: (i, 0)),        # x tile
                resident(prep["w1"].shape), resident(prep["b1"].shape),
                resident(prep["w2"].shape), resident(prep["b2"].shape),
                resident(prep["w3"].shape), resident(prep["b3"].shape),
                resident(prep["w4"].shape), resident(prep["b4"].shape),
            ],
            out_specs=pl.BlockSpec((TB, NCp), lambda i: (i, 0)),
        ),
        compiler_params=pltpu.CompilerParams(
            dimension_semantics=("parallel",)),   # v7x: shard batch over 2 TCs
        cost_estimate=cost,
    )(x_p,
      prep["w1"], prep["b1"],
      prep["w2"], prep["b2"],
      prep["w3"], prep["b3"],
      prep["w4"], prep["b4"])

    # Only B x num_classes values are real; cast that small slice back to f32.
    return out_p[:B, :num_classes].astype(jnp.float32)


def init_params(key, feature_dim, num_classes=3):
    """Synthetic parameters matching nn.Linear / BatchNorm1d shapes."""
    dims = [feature_dim, 256, 128, 64, num_classes]
    params = {}
    keys = jax.random.split(key, 20)
    k_idx = 0
    for layer in range(1, 5):
        d_in, d_out = dims[layer - 1], dims[layer]
        kw, kb = keys[k_idx], keys[k_idx + 1]
        k_idx += 2
        bound = 1.0 / jnp.sqrt(d_in)
        # stored (in, out) == PyTorch weight.T
        params[f"w{layer}"] = jax.random.uniform(
            kw, (d_in, d_out), jnp.float32, -bound, bound)
        params[f"b{layer}"] = jax.random.uniform(
            kb, (1, d_out), jnp.float32, -bound, bound)
    # Non-trivial eval-mode BatchNorm1d running stats (exercises the BN fold).
    for layer, d_out in zip((1, 2, 3), (256, 128, 64)):
        kg, kbe, km, kv = jax.random.split(keys[k_idx], 4)
        k_idx += 1
        params[f"g{layer}"] = jax.random.uniform(
            kg, (1, d_out), jnp.float32, 0.5, 1.5)
        params[f"be{layer}"] = 0.1 * jax.random.normal(
            kbe, (1, d_out), jnp.float32)
        params[f"rm{layer}"] = 0.1 * jax.random.normal(
            km, (1, d_out), jnp.float32)
        params[f"rv{layer}"] = jax.random.uniform(
            kv, (1, d_out), jnp.float32, 0.5, 1.5)
    return params


def reference_head(x, params):
    """Pure-JAX f32 reference of the module forward (fc -> bn -> relu)."""
    h = x
    for layer in (1, 2, 3):
        z = h @ params[f"w{layer}"] + params[f"b{layer}"]
        inv_std = jax.lax.rsqrt(params[f"rv{layer}"] + BN_EPS)
        z = (z - params[f"rm{layer}"]) * inv_std * params[f"g{layer}"] \
            + params[f"be{layer}"]
        h = jnp.maximum(z, 0.0)
    return h @ params["w4"] + params["b4"]


if __name__ == "__main__":
    B = 2            # batch
    D = 128          # feature_dim (ViT hidden-size stand-in; lane-aligned)
    NUM_CLASSES = 3

    key = jax.random.PRNGKey(0)
    k_x, k_p = jax.random.split(key)
    x = jax.random.normal(k_x, (B, D), jnp.float32)  # CLS-token features
    params = init_params(k_p, D, NUM_CLASSES)

    prep = prepare_params(params, D, NUM_CLASSES, weights_dtype=jnp.bfloat16)

    logits = multi_model_head(x, prep, num_classes=NUM_CLASSES)
    logits = jax.block_until_ready(logits)

    ref = reference_head(x, params)
    assert logits.shape == (B, NUM_CLASSES)
    # bf16 x / weights / activations / output with f32 MXU accumulation
    # -> loosened tolerance vs the pure-f32 reference.
    assert jnp.allclose(logits, ref, atol=1e-1, rtol=1e-1), \
        "mismatch vs reference"

    print("KERNEL_OK")
</pallas_src>

<mosaic_0001>
module attributes {stable_mosaic.version = 11 : i64} {
  func.func @_mlp_head_kernel(%arg0: i32, %arg1: memref<8x128xbf16, #tpu.memory_space<vmem>>, %arg2: memref<128x256xbf16, #tpu.memory_space<vmem>>, %arg3: memref<1x256xf32, #tpu.memory_space<vmem>>, %arg4: memref<256x128xbf16, #tpu.memory_space<vmem>>, %arg5: memref<1x128xf32, #tpu.memory_space<vmem>>, %arg6: memref<128x128xbf16, #tpu.memory_space<vmem>>, %arg7: memref<1x128xf32, #tpu.memory_space<vmem>>, %arg8: memref<128x128xbf16, #tpu.memory_space<vmem>>, %arg9: memref<1x128xf32, #tpu.memory_space<vmem>>, %arg10: memref<8x128xbf16, #tpu.memory_space<vmem>>) attributes {dimension_semantics = [#tpu.dimension_semantics<parallel>], iteration_bounds = array<i64: 1>, scalar_prefetch = 0 : i64, scratch_operands = 0 : i64, tpu.core_type = #tpu.core_type<tc>, window_params = [{transform_indices = @transform_0, window_bounds = array<i64: 8, 128>}, {pipeline_mode = #tpu.pipeline_mode<synchronous>, transform_indices = @transform_1, window_bounds = array<i64: 128, 256>}, {pipeline_mode = #tpu.pipeline_mode<synchronous>, transform_indices = @transform_2, window_bounds = array<i64: 1, 256>}, {pipeline_mode = #tpu.pipeline_mode<synchronous>, transform_indices = @transform_3, window_bounds = array<i64: 256, 128>}, {pipeline_mode = #tpu.pipeline_mode<synchronous>, transform_indices = @transform_4, window_bounds = array<i64: 1, 128>}, {pipeline_mode = #tpu.pipeline_mode<synchronous>, transform_indices = @transform_5, window_bounds = array<i64: 128, 128>}, {pipeline_mode = #tpu.pipeline_mode<synchronous>, transform_indices = @transform_6, window_bounds = array<i64: 1, 128>}, {pipeline_mode = #tpu.pipeline_mode<synchronous>, transform_indices = @transform_7, window_bounds = array<i64: 128, 128>}, {pipeline_mode = #tpu.pipeline_mode<synchronous>, transform_indices = @transform_8, window_bounds = array<i64: 1, 128>}, {transform_indices = @transform_9, window_bounds = array<i64: 8, 128>}]} {
    %c0 = arith.constant 0 : index
    %c0_0 = arith.constant 0 : index
    %0 = vector.load %arg1[%c0, %c0_0] : memref<8x128xbf16, #tpu.memory_space<vmem>>, vector<8x128xbf16>
    %c0_1 = arith.constant 0 : index
    %c0_2 = arith.constant 0 : index
    %1 = vector.load %arg2[%c0_1, %c0_2] : memref<128x256xbf16, #tpu.memory_space<vmem>>, vector<128x256xbf16>
    %cst = arith.constant dense<0.000000e+00> : vector<8x256xf32>
    %2 = tpu.matmul %0, %1, %cst {dimension_numbers = #tpu.dot_dimension_numbers<[1], [0], [0], [1], [0, 0, 1, 1], [], []>} : vector<8x128xbf16>, vector<128x256xbf16>, vector<8x256xf32> -> vector<8x256xf32>
    %c0_3 = arith.constant 0 : index
    %c0_4 = arith.constant 0 : index
    %3 = vector.load %arg3[%c0_3, %c0_4] : memref<1x256xf32, #tpu.memory_space<vmem>>, vector<1x256xf32>
    %4 = vector.broadcast %3 : vector<1x256xf32> to vector<8x256xf32>
    %5 = arith.addf %2, %4 : vector<8x256xf32>
    %cst_5 = arith.constant 0.000000e+00 : f32
    %6 = vector.broadcast %cst_5 : f32 to vector<8x256xf32>
    %7 = arith.maximumf %5, %6 : vector<8x256xf32>
    %8 = arith.truncf %7 : vector<8x256xf32> to vector<8x256xbf16>
    %c0_6 = arith.constant 0 : index
    %c0_7 = arith.constant 0 : index
    %9 = vector.load %arg4[%c0_6, %c0_7] : memref<256x128xbf16, #tpu.memory_space<vmem>>, vector<256x128xbf16>
    %cst_8 = arith.constant dense<0.000000e+00> : vector<8x128xf32>
    %10 = tpu.matmul %8, %9, %cst_8 {dimension_numbers = #tpu.dot_dimension_numbers<[1], [0], [0], [1], [0, 0, 1, 1], [], []>} : vector<8x256xbf16>, vector<256x128xbf16>, vector<8x128xf32> -> vector<8x128xf32>
    %c0_9 = arith.constant 0 : index
    %c0_10 = arith.constant 0 : index
    %11 = vector.load %arg5[%c0_9, %c0_10] : memref<1x128xf32, #tpu.memory_space<vmem>>, vector<1x128xf32>
    %12 = vector.broadcast %11 : vector<1x128xf32> to vector<8x128xf32>
    %13 = arith.addf %10, %12 : vector<8x128xf32>
    %cst_11 = arith.constant 0.000000e+00 : f32
    %14 = vector.broadcast %cst_11 : f32 to vector<8x128xf32>
    %15 = arith.maximumf %13, %14 : vector<8x128xf32>
    %16 = arith.truncf %15 : vector<8x128xf32> to vector<8x128xbf16>
    %c0_12 = arith.constant 0 : index
    %c0_13 = arith.constant 0 : index
    %17 = vector.load %arg6[%c0_12, %c0_13] : memref<128x128xbf16, #tpu.memory_space<vmem>>, vector<128x128xbf16>
    %cst_14 = arith.constant dense<0.000000e+00> : vector<8x128xf32>
    %18 = tpu.matmul %16, %17, %cst_14 {dimension_numbers = #tpu.dot_dimension_numbers<[1], [0], [0], [1], [0, 0, 1, 1], [], []>} : vector<8x128xbf16>, vector<128x128xbf16>, vector<8x128xf32> -> vector<8x128xf32>
    %c0_15 = arith.constant 0 : index
    %c0_16 = arith.constant 0 : index
    %19 = vector.load %arg7[%c0_15, %c0_16] : memref<1x128xf32, #tpu.memory_space<vmem>>, vector<1x128xf32>
    %20 = vector.broadcast %19 : vector<1x128xf32> to vector<8x128xf32>
    %21 = arith.addf %18, %20 : vector<8x128xf32>
    %cst_17 = arith.constant 0.000000e+00 : f32
    %22 = vector.broadcast %cst_17 : f32 to vector<8x128xf32>
    %23 = arith.maximumf %21, %22 : vector<8x128xf32>
    %24 = arith.truncf %23 : vector<8x128xf32> to vector<8x128xbf16>
    %c0_18 = arith.constant 0 : index
    %c0_19 = arith.constant 0 : index
    %25 = vector.load %arg8[%c0_18, %c0_19] : memref<128x128xbf16, #tpu.memory_space<vmem>>, vector<128x128xbf16>
    %cst_20 = arith.constant dense<0.000000e+00> : vector<8x128xf32>
    %26 = tpu.matmul %24, %25, %cst_20 {dimension_numbers = #tpu.dot_dimension_numbers<[1], [0], [0], [1], [0, 0, 1, 1], [], []>} : vector<8x128xbf16>, vector<128x128xbf16>, vector<8x128xf32> -> vector<8x128xf32>
    %c0_21 = arith.constant 0 : index
    %c0_22 = arith.constant 0 : index
    %27 = vector.load %arg9[%c0_21, %c0_22] : memref<1x128xf32, #tpu.memory_space<vmem>>, vector<1x128xf32>
    %28 = vector.broadcast %27 : vector<1x128xf32> to vector<8x128xf32>
    %29 = arith.addf %26, %28 : vector<8x128xf32>
    %30 = arith.truncf %29 : vector<8x128xf32> to vector<8x128xbf16>
    %c0_23 = arith.constant 0 : index
    %c0_24 = arith.constant 0 : index
    %31 = vector.load %arg10[%c0_23, %c0_24] : memref<8x128xbf16, #tpu.memory_space<vmem>>, vector<8x128xbf16>
    tpu.vector_store %arg10[%c0_23, %c0_24], %30 {strides = array<i32>} : memref<8x128xbf16, #tpu.memory_space<vmem>>, vector<8x128xbf16>,
    return
  }
  func.func @transform_0(%arg0: i32) -> (i32, i32) {
    %c0_i32 = arith.constant 0 : i32
    %c0_i32_0 = arith.constant 0 : i32
    return %arg0, %c0_i32 : i32, i32
  }
  func.func @transform_1(%arg0: i32) -> (i32, i32) {
    %c0_i32 = arith.constant 0 : i32
    %c0_i32_0 = arith.constant 0 : i32
    %c0_i32_1 = arith.constant 0 : i32
    return %c0_i32, %c0_i32_0 : i32, i32
  }
  func.func @transform_2(%arg0: i32) -> (i32, i32) {
    %c0_i32 = arith.constant 0 : i32
    %c0_i32_0 = arith.constant 0 : i32
    %c0_i32_1 = arith.constant 0 : i32
    return %c0_i32, %c0_i32_0 : i32, i32
  }
  func.func @transform_3(%arg0: i32) -> (i32, i32) {
    %c0_i32 = arith.constant 0 : i32
    %c0_i32_0 = arith.constant 0 : i32
    %c0_i32_1 = arith.constant 0 : i32
    return %c0_i32, %c0_i32_0 : i32, i32
  }
  func.func @transform_4(%arg0: i32) -> (i32, i32) {
    %c0_i32 = arith.constant 0 : i32
    %c0_i32_0 = arith.constant 0 : i32
    %c0_i32_1 = arith.constant 0 : i32
    return %c0_i32, %c0_i32_0 : i32, i32
  }
  func.func @transform_5(%arg0: i32) -> (i32, i32) {
    %c0_i32 = arith.constant 0 : i32
    %c0_i32_0 = arith.constant 0 : i32
    %c0_i32_1 = arith.constant 0 : i32
    return %c0_i32, %c0_i32_0 : i32, i32
  }
  func.func @transform_6(%arg0: i32) -> (i32, i32) {
    %c0_i32 = arith.constant 0 : i32
    %c0_i32_0 = arith.constant 0 : i32
    %c0_i32_1 = arith.constant 0 : i32
    return %c0_i32, %c0_i32_0 : i32, i32
  }
  func.func @transform_7(%arg0: i32) -> (i32, i32) {
    %c0_i32 = arith.constant 0 : i32
    %c0_i32_0 = arith.constant 0 : i32
    %c0_i32_1 = arith.constant 0 : i32
    return %c0_i32, %c0_i32_0 : i32, i32
  }
  func.func @transform_8(%arg0: i32) -> (i32, i32) {
    %c0_i32 = arith.constant 0 : i32
    %c0_i32_0 = arith.constant 0 : i32
    %c0_i32_1 = arith.constant 0 : i32
    return %c0_i32, %c0_i32_0 : i32, i32
  }
  func.func @transform_9(%arg0: i32) -> (i32, i32) {
    %c0_i32 = arith.constant 0 : i32
    %c0_i32_0 = arith.constant 0 : i32
    return %arg0, %c0_i32 : i32, i32
  }
}

</mosaic_0001>

<llo_original>
// kernel: multi_model_head.1
$region0: #{multi_model_head.1}
  #allocation0 [shape = 'u32[]', space=smem, size = 0x4, offset = 0x4, fixed_abs, tag = 'smem constant byte address 0x4 - core index']
  #allocation1 [shape = 'u32[144,128]{1,0:T(1,128)}', space=vmem, size = 0x12000, scoped, tag = 'internal scratch']
  %s0 = inlined_call_operand.vmem [shape: bf16[8,128], index: 0, kind: input, shape index: {}]
  %s1 = inlined_call_operand.hbm [shape: bf16[128,256], index: 1, kind: input, shape index: {}]
  %s2 = inlined_call_operand.vmem [shape: f32[1,256], index: 2, kind: input, shape index: {}]
  %s3 = inlined_call_operand.hbm [shape: bf16[256,128], index: 3, kind: input, shape index: {}]
  %s4 = inlined_call_operand.vmem [shape: f32[1,128], index: 4, kind: input, shape index: {}]
  %s5 = inlined_call_operand.hbm [shape: bf16[128,128], index: 5, kind: input, shape index: {}]
  %s6 = inlined_call_operand.vmem [shape: f32[1,128], index: 6, kind: input, shape index: {}]
  %s7 = inlined_call_operand.hbm [shape: bf16[128,128], index: 7, kind: input, shape index: {}]
  %s8 = inlined_call_operand.vmem [shape: f32[1,128], index: 8, kind: input, shape index: {}]
  %s9 = inlined_call_operand.vmem [shape: bf16[8,128], index: 9, kind: output, shape index: {}]
  %s10 = sld [smem:[#allocation0]]
  $region62: #{multi_model_head.1} parent=0
    _
  %s12 = ssub.s32 1, %s10
  %s13 = scalar_select 0, %s12, %s10
  $region1: #{multi_model_head.1} parent=0
    #allocation2 [shape = 'u8[65536]{0}', space=vmem, size = 0x10000, scoped, tag = 'input window, operand 1, single buffered']
    #allocation3 [shape = 's32[1]{0}', space=sflag, size = 0x4, scoped, tag = 'scoped memory for multi_model_head.1']
    #allocation4 [shape = 'u8[65536]{0}', space=vmem, size = 0x10000, scoped, tag = 'input window, operand 3, single buffered']
    #allocation5 [shape = 's32[1]{0}', space=sflag, size = 0x4, scoped, tag = 'scoped memory for multi_model_head.1']
    #allocation6 [shape = 'u8[32768]{0}', space=vmem, size = 0x8000, scoped, tag = 'input window, operand 5, single buffered']
    #allocation7 [shape = 'u8[32768]{0}', space=vmem, size = 0x8000, scoped, tag = 'input window, operand 7, single buffered']
    #allocation8 [shape = 's32[1]{0}', space=sflag, size = 0x4, scoped, tag = 'scoped memory for multi_model_head.1']
    %14 = vsyncpa [#allocation3], 0
    %15 = vsyncpa [#allocation5], 0
    %16 = vsyncpa [#allocation8], 0
    // Predicated region
    $region2: #{multi_model_head.1} parent=1 // pred_check
      _
    $region3: #{multi_model_head.1} parent=1 // pred_check_branch
      %18 = sbr.rel (0) target = $region5
    $region4: #{multi_model_head.1} parent=1 // pred_region
      _
    $region5: #{multi_model_head.1} parent=1 // pred_fallthru
      _
    // Predicated region
    $region6: #{multi_model_head.1} parent=1 // pred_check
      _
    $region7: #{multi_model_head.1} parent=1 // pred_check_branch
      %20 = sbr.rel (0) target = $region9
    $region8: #{multi_model_head.1} parent=1 // pred_region
      %s22 = ssub.s32 2048, 2048
      %23 = vsyncadd [#allocation3], %s22
      %s24 = sshll.u32 [#allocation2], 4
      %s25 = int_to_ptr.vmem [resolvable:$true] %s24
      %30 = dma.hbm_to_vmem [thread:$0]  %s1, 2048, %s25, [#allocation3], 128, 128, 8
    $region9: #{multi_model_head.1} parent=1 // pred_fallthru
      _
    // Predicated region
    $region10: #{multi_model_head.1} parent=1 // pred_check
      _
    $region11: #{multi_model_head.1} parent=1 // pred_check_branch
      %32 = sbr.rel (0) target = $region13
    $region12: #{multi_model_head.1} parent=1 // pred_region
      _
    $region13: #{multi_model_head.1} parent=1 // pred_fallthru
      _
    // Predicated region
    $region14: #{multi_model_head.1} parent=1 // pred_check
      _
    $region15: #{multi_model_head.1} parent=1 // pred_check_branch
      %34 = sbr.rel (0) target = $region17
    $region16: #{multi_model_head.1} parent=1 // pred_region
      %s36 = ssub.s32 2048, 2048
      %37 = vsyncadd [#allocation5], %s36
      %s38 = sshll.u32 [#allocation4], 4
      %s39 = int_to_ptr.vmem [resolvable:$true] %s38
      %44 = dma.hbm_to_vmem [thread:$0]  %s3, 2048, %s39, [#allocation5], 64, 64, 4
    $region17: #{multi_model_head.1} parent=1 // pred_fallthru
      _
    // Predicated region
    $region18: #{multi_model_head.1} parent=1 // pred_check
      _
    $region19: #{multi_model_head.1} parent=1 // pred_check_branch
      %46 = sbr.rel (0) target = $region21
    $region20: #{multi_model_head.1} parent=1 // pred_region
      _
    $region21: #{multi_model_head.1} parent=1 // pred_fallthru
      _
    // Predicated region
    $region22: #{multi_model_head.1} parent=1 // pred_check
      _
    $region23: #{multi_model_head.1} parent=1 // pred_check_branch
      %48 = sbr.rel (0) target = $region25
    $region24: #{multi_model_head.1} parent=1 // pred_region
      %s50 = ssub.s32 1024, 1024
      %51 = vsyncadd [#allocation5], %s50
      %s52 = sshll.u32 [#allocation6], 4
      %s53 = int_to_ptr.vmem [resolvable:$true] %s52
      %58 = dma.hbm_to_vmem [thread:$0]  %s5, 1024, %s53, [#allocation5], 64, 64, 4
    $region25: #{multi_model_head.1} parent=1 // pred_fallthru
      _
    // Predicated region
    $region26: #{multi_model_head.1} parent=1 // pred_check
      _
    $region27: #{multi_model_head.1} parent=1 // pred_check_branch
      %60 = sbr.rel (0) target = $region29
    $region28: #{multi_model_head.1} parent=1 // pred_region
      _
    $region29: #{multi_model_head.1} parent=1 // pred_fallthru
      _
    // Predicated region
    $region30: #{multi_model_head.1} parent=1 // pred_check
      _
    $region31: #{multi_model_head.1} parent=1 // pred_check_branch
      %62 = sbr.rel (0) target = $region33
    $region32: #{multi_model_head.1} parent=1 // pred_region
      %s64 = ssub.s32 1024, 1024
      %65 = vsyncadd [#allocation8], %s64
      %s66 = sshll.u32 [#allocation7], 4
      %s67 = int_to_ptr.vmem [resolvable:$true] %s66
      %72 = dma.hbm_to_vmem [thread:$0]  %s7, 1024, %s67, [#allocation8], 64, 64, 4
    $region33: #{multi_model_head.1} parent=1 // pred_fallthru
      _
    // Predicated region
    $region34: #{multi_model_head.1} parent=1 // pred_check
      _
    $region35: #{multi_model_head.1} parent=1 // pred_check_branch
      %74 = sbr.rel (0) target = $region37
    $region36: #{multi_model_head.1} parent=1 // pred_region
      _
    $region37: #{multi_model_head.1} parent=1 // pred_fallthru
      _
    // Predicated region
    $region38: #{multi_model_head.1} parent=1 // pred_check
      _
    $region39: #{multi_model_head.1} parent=1 // pred_check_branch
      %76 = sbr.rel (0) target = $region41
    $region40: #{multi_model_head.1} parent=1 // pred_region
      %77 = dma.done [#allocation3], 2048
    $region41: #{multi_model_head.1} parent=1 // pred_fallthru
      _
    // Predicated region
    $region42: #{multi_model_head.1} parent=1 // pred_check
      _
    $region43: #{multi_model_head.1} parent=1 // pred_check_branch
      %79 = sbr.rel (0) target = $region45
    $region44: #{multi_model_head.1} parent=1 // pred_region
      %80 = dma.done [#allocation5], 2048
    $region45: #{multi_model_head.1} parent=1 // pred_fallthru
      _
    // Predicated region
    $region46: #{multi_model_head.1} parent=1 // pred_check
      _
    $region47: #{multi_model_head.1} parent=1 // pred_check_branch
      %82 = sbr.rel (0) target = $region49
    $region48: #{multi_model_head.1} parent=1 // pred_region
      %83 = dma.done [#allocation5], 1024
    $region49: #{multi_model_head.1} parent=1 // pred_fallthru
      _
    // Predicated region
    $region50: #{multi_model_head.1} parent=1 // pred_check
      _
    $region51: #{multi_model_head.1} parent=1 // pred_check_branch
      %85 = sbr.rel (0) target = $region53
    $region52: #{multi_model_head.1} parent=1 // pred_region
      %86 = dma.done [#allocation8], 1024
    $region53: #{multi_model_head.1} parent=1 // pred_fallthru
      _
    %v88 = vld [vmem:[%s0] sm:$0xf]
    %v89 = vld [vmem:[#allocation2] sm:$0xff]
    %v90 = vld [vmem:[#allocation2 + $0x8] sm:$0xff]
    %v91 = vld [vmem:[#allocation2 + $0x10] sm:$0xff]
    %v92 = vld [vmem:[#allocation2 + $0x18] sm:$0xff]
    %v93 = vld [vmem:[#allocation2 + $0x20] sm:$0xff]
    %v94 = vld [vmem:[#allocation2 + $0x28] sm:$0xff]
    %v95 = vld [vmem:[#allocation2 + $0x30] sm:$0xff]
    %v96 = vld [vmem:[#allocation2 + $0x38] sm:$0xff]
    %v97 = vld [vmem:[#allocation2 + $0x40] sm:$0xff]
    %v98 = vld [vmem:[#allocation2 + $0x48] sm:$0xff]
    %v99 = vld [vmem:[#allocation2 + $0x50] sm:$0xff]
    %v100 = vld [vmem:[#allocation2 + $0x58] sm:$0xff]
    %v101 = vld [vmem:[#allocation2 + $0x60] sm:$0xff]
    %v102 = vld [vmem:[#allocation2 + $0x68] sm:$0xff]
    %v103 = vld [vmem:[#allocation2 + $0x70] sm:$0xff]
    %v104 = vld [vmem:[#allocation2 + $0x78] sm:$0xff]
    %v105 = vld [vmem:[%s2] sm:$0x3]
    %v107 = vlaneseq
    %v108 = vshrl.u32 %v107, 7
    %v109 = vsub.s32 0, %v108
    %v110 = vrot.slane %v105, %v109
    %v111 = vlaneseq
    %v112 = vshrl.u32 %v111, 7
    %v113 = vsub.s32 1, %v112
    %v114 = vrot.slane %v105, %v113
    %v133 = vunpack.c.l.b16 %v89
    %v134 = vunpack.c.h.b16 %v89
    %v135 = vunpack.c.l.b16 %v90
    %v136 = vunpack.c.h.b16 %v90
    %v137 = vunpack.c.l.b16 %v91
    %v138 = vunpack.c.h.b16 %v91
    %v139 = vunpack.c.l.b16 %v92
    %v140 = vunpack.c.h.b16 %v92
    %v141 = vunpack.c.l.b16 %v93
    %v142 = vunpack.c.h.b16 %v93
    %v143 = vunpack.c.l.b16 %v94
    %v144 = vunpack.c.h.b16 %v94
    %v145 = vunpack.c.l.b16 %v95
    %v146 = vunpack.c.h.b16 %v95
    %v147 = vunpack.c.l.b16 %v96
    %v148 = vunpack.c.h.b16 %v96
    %v149 = vunpack.c.l.b16 %v97
    %v150 = vunpack.c.h.b16 %v97
    %v151 = vunpack.c.l.b16 %v98
    %v152 = vunpack.c.h.b16 %v98
    %v153 = vunpack.c.l.b16 %v99
    %v154 = vunpack.c.h.b16 %v99
    %v155 = vunpack.c.l.b16 %v100
    %v156 = vunpack.c.h.b16 %v100
    %v157 = vunpack.c.l.b16 %v101
    %v158 = vunpack.c.h.b16 %v101
    %v159 = vunpack.c.l.b16 %v102
    %v160 = vunpack.c.h.b16 %v102
    %v161 = vunpack.c.l.b16 %v103
    %v162 = vunpack.c.h.b16 %v103
    %v163 = vunpack.c.l.b16 %v104
    %v164 = vunpack.c.h.b16 %v104
    %v165 = vpack.c.b16 %v135, %v133
    %v166 = vpack.c.b16 %v136, %v134
    %v167 = vpack.c.b16 %v139, %v137
    %v168 = vpack.c.b16 %v140, %v138
    %v169 = vpack.c.b16 %v143, %v141
    %v170 = vpack.c.b16 %v144, %v142
    %v171 = vpack.c.b16 %v147, %v145
    %v172 = vpack.c.b16 %v148, %v146
    %v173 = vpack.c.b16 %v151, %v149
    %v174 = vpack.c.b16 %v152, %v150
    %v175 = vpack.c.b16 %v155, %v153
    %v176 = vpack.c.b16 %v156, %v154
    %v177 = vpack.c.b16 %v159, %v157
    %v178 = vpack.c.b16 %v160, %v158
    %v179 = vpack.c.b16 %v163, %v161
    %v180 = vpack.c.b16 %v164, %v162
    %197 = vmatprep.subr.bf16.mxu0 %v166
    %198 = vmatpush1.bf16.msra.mxu0 %v165
    %199 = vmatprep.subr.bf16.mxu0 %v168
    %200 = vmatpush1.bf16.msra.mxu0 %v167
    %201 = vmatprep.subr.bf16.mxu0 %v170
    %202 = vmatpush1.bf16.msra.mxu0 %v169
    %203 = vmatprep.subr.bf16.mxu0 %v172
    %204 = vmatpush1.bf16.msra.mxu0 %v171
    %205 = vmatprep.subr.bf16.mxu0 %v174
    %206 = vmatpush1.bf16.msra.mxu0 %v173
    %207 = vmatprep.subr.bf16.mxu0 %v176
    %208 = vmatpush1.bf16.msra.mxu0 %v175
    %209 = vmatprep.subr.bf16.mxu0 %v178
    %210 = vmatpush1.bf16.msra.mxu0 %v177
    %211 = vmatprep.subr.bf16.mxu0 %v180
    %212 = vmatpush1.bf16.msra.mxu0 %v179
    %213 = vmatprep.subr.bf16.mxu0 0
    %214 = vmatpush1.bf16.msra.mxu0 0
    %215 = vmatprep.subr.bf16.mxu0 0
    %216 = vmatpush1.bf16.msra.mxu0 0
    %217 = vmatprep.subr.bf16.mxu0 0
    %218 = vmatpush1.bf16.msra.mxu0 0
    %219 = vmatprep.subr.bf16.mxu0 0
    %220 = vmatpush1.bf16.msra.mxu0 0
    %221 = vmatprep.subr.bf16.mxu0 0
    %222 = vmatpush1.bf16.msra.mxu0 0
    %223 = vmatprep.subr.bf16.mxu0 0
    %224 = vmatpush1.bf16.msra.mxu0 0
    %225 = vmatprep.subr.bf16.mxu0 0
    %226 = vmatpush1.bf16.msra.mxu0 0
    %227 = vmatprep.subr.bf16.mxu0 0
    %228 = vmatpush1.bf16.msra.mxu0 0
    %229 = vmatprep.mubr.bf16.mxu0 0
    %230 = vmatmul.mubr.bf16.gmra.mrb[0].mxu0 %v88
    %v231 = vpop.f32.mrb[0].mxu0
    %v232 = vadd.f32 %v110, %v231
    %v233 = vpop.f32.mrb[0].mxu0
    %v234 = vadd.f32 %v114, %v233
    %v235 = vpop.f32.mrb[0].mxu0
    %v236 = vpop.f32.mrb[0].mxu0
    %237 = vdwg.mxu0
    %v238 = vmax.f32 %v232, 0.0
    %v239 = vmax.f32 %v234, 0.0
    %v240 = vpack.c.bf16 %v238, %v238
    %v241 = vpack.c.bf16 %v239, %v239
    %v242 = vld [vmem:[#allocation4] sm:$0xf]
    %v243 = vld [vmem:[#allocation4 + $0x4] sm:$0xf]
    %v244 = vld [vmem:[#allocation4 + $0x8] sm:$0xf]
    %v245 = vld [vmem:[#allocation4 + $0xc] sm:$0xf]
    %v246 = vld [vmem:[#allocation4 + $0x10] sm:$0xf]
    %v247 = vld [vmem:[#allocation4 + $0x14] sm:$0xf]
    %v248 = vld [vmem:[#allocation4 + $0x18] sm:$0xf]
    %v249 = vld [vmem:[#allocation4 + $0x1c] sm:$0xf]
    %v250 = vld [vmem:[#allocation4 + $0x20] sm:$0xf]
    %v251 = vld [vmem:[#allocation4 + $0x24] sm:$0xf]
    %v252 = vld [vmem:[#allocation4 + $0x28] sm:$0xf]
    %v253 = vld [vmem:[#allocation4 + $0x2c] sm:$0xf]
    %v254 = vld [vmem:[#allocation4 + $0x30] sm:$0xf]
    %v255 = vld [vmem:[#allocation4 + $0x34] sm:$0xf]
    %v256 = vld [vmem:[#allocation4 + $0x38] sm:$0xf]
    %v257 = vld [vmem:[#allocation4 + $0x3c] sm:$0xf]
    %v258 = vld [vmem:[#allocation4 + $0x40] sm:$0xf]
    %v259 = vld [vmem:[#allocation4 + $0x44] sm:$0xf]
    %v260 = vld [vmem:[#allocation4 + $0x48] sm:$0xf]
    %v261 = vld [vmem:[#allocation4 + $0x4c] sm:$0xf]
    %v262 = vld [vmem:[#allocation4 + $0x50] sm:$0xf]
    %v263 = vld [vmem:[#allocation4 + $0x54] sm:$0xf]
    %v264 = vld [vmem:[#allocation4 + $0x58] sm:$0xf]
    %v265 = vld [vmem:[#allocation4 + $0x5c] sm:$0xf]
    %v266 = vld [vmem:[#allocation4 + $0x60] sm:$0xf]
    %v267 = vld [vmem:[#allocation4 + $0x64] sm:$0xf]
    %v268 = vld [vmem:[#allocation4 + $0x68] sm:$0xf]
    %v269 = vld [vmem:[#allocation4 + $0x6c] sm:$0xf]
    %v270 = vld [vmem:[#allocation4 + $0x70] sm:$0xf]
    %v271 = vld [vmem:[#allocation4 + $0x74] sm:$0xf]
    %v272 = vld [vmem:[#allocation4 + $0x78] sm:$0xf]
    %v273 = vld [vmem:[#allocation4 + $0x7c] sm:$0xf]
    %v274 = vld [vmem:[%s4] sm:$0x1]
    %v276 = vlaneseq
    %v277 = vshrl.u32 %v276, 7
    %v278 = vsub.s32 0, %v277
    %v279 = vrot.slane %v274, %v278
    %v313 = vunpack.c.l.b16 %v242
    %v314 = vunpack.c.l.b16 %v243
    %v315 = vunpack.c.l.b16 %v244
    %v316 = vunpack.c.l.b16 %v245
    %v317 = vunpack.c.l.b16 %v246
    %v318 = vunpack.c.l.b16 %v247
    %v319 = vunpack.c.l.b16 %v248
    %v320 = vunpack.c.l.b16 %v249
    %v321 = vunpack.c.l.b16 %v250
    %v322 = vunpack.c.l.b16 %v251
    %v323 = vunpack.c.l.b16 %v252
    %v324 = vunpack.c.l.b16 %v253
    %v325 = vunpack.c.l.b16 %v254
    %v326 = vunpack.c.l.b16 %v255
    %v327 = vunpack.c.l.b16 %v256
    %v328 = vunpack.c.l.b16 %v257
    %v329 = vunpack.c.l.b16 %v258
    %v330 = vunpack.c.l.b16 %v259
    %v331 = vunpack.c.l.b16 %v260
    %v332 = vunpack.c.l.b16 %v261
    %v333 = vunpack.c.l.b16 %v262
    %v334 = vunpack.c.l.b16 %v263
    %v335 = vunpack.c.l.b16 %v264
    %v336 = vunpack.c.l.b16 %v265
    %v337 = vunpack.c.l.b16 %v266
    %v338 = vunpack.c.l.b16 %v267
    %v339 = vunpack.c.l.b16 %v268
    %v340 = vunpack.c.l.b16 %v269
    %v341 = vunpack.c.l.b16 %v270
    %v342 = vunpack.c.l.b16 %v271
    %v343 = vunpack.c.l.b16 %v272
    %v344 = vunpack.c.l.b16 %v273
    %v345 = vpack.c.b16 %v314, %v313
    %v346 = vpack.c.b16 %v316, %v315
    %v347 = vpack.c.b16 %v318, %v317
    %v348 = vpack.c.b16 %v320, %v319
    %v349 = vpack.c.b16 %v322, %v321
    %v350 = vpack.c.b16 %v324, %v323
    %v351 = vpack.c.b16 %v326, %v325
    %v352 = vpack.c.b16 %v328, %v327
    %v353 = vpack.c.b16 %v330, %v329
    %v354 = vpack.c.b16 %v332, %v331
    %v355 = vpack.c.b16 %v334, %v333
    %v356 = vpack.c.b16 %v336, %v335
    %v357 = vpack.c.b16 %v338, %v337
    %v358 = vpack.c.b16 %v340, %v339
    %v359 = vpack.c.b16 %v342, %v341
    %v360 = vpack.c.b16 %v344, %v343
    %377 = vmatprep.subr.bf16.mxu0 0
    %378 = vmatpush1.bf16.msra.mxu0 %v345
    %379 = vmatprep.subr.bf16.mxu0 0
    %380 = vmatpush1.bf16.msra.mxu0 %v346
    %381 = vmatprep.subr.bf16.mxu0 0
    %382 = vmatpush1.bf16.msra.mxu0 %v347
    %383 = vmatprep.subr.bf16.mxu0 0
    %384 = vmatpush1.bf16.msra.mxu0 %v348
    %385 = vmatprep.subr.bf16.mxu0 0
    %386 = vmatpush1.bf16.msra.mxu0 %v349
    %387 = vmatprep.subr.bf16.mxu0 0
    %388 = vmatpush1.bf16.msra.mxu0 %v350
    %389 = vmatprep.subr.bf16.mxu0 0
    %390 = vmatpush1.bf16.msra.mxu0 %v351
    %391 = vmatprep.subr.bf16.mxu0 0
    %392 = vmatpush1.bf16.msra.mxu0 %v352
    %393 = vmatprep.subr.bf16.mxu0 0
    %394 = vmatpush1.bf16.msra.mxu0 %v353
    %395 = vmatprep.subr.bf16.mxu0 0
    %396 = vmatpush1.bf16.msra.mxu0 %v354
    %397 = vmatprep.subr.bf16.mxu0 0
    %398 = vmatpush1.bf16.msra.mxu0 %v355
    %399 = vmatprep.subr.bf16.mxu0 0
    %400 = vmatpush1.bf16.msra.mxu0 %v356
    %401 = vmatprep.subr.bf16.mxu0 0
    %402 = vmatpush1.bf16.msra.mxu0 %v357
    %403 = vmatprep.subr.bf16.mxu0 0
    %404 = vmatpush1.bf16.msra.mxu0 %v358
    %405 = vmatprep.subr.bf16.mxu0 0
    %406 = vmatpush1.bf16.msra.mxu0 %v359
    %407 = vmatprep.subr.bf16.mxu0 0
    %408 = vmatpush1.bf16.msra.mxu0 %v360
    %409 = vmatprep.mubr.bf16.mxu0 %v241
    %410 = vmatmul.mubr.bf16.gmra.mrb[0].mxu0 %v240
    %v411 = vpop.f32.mrb[0].mxu0
    %v412 = vadd.f32 %v279, %v411
    %v413 = vpop.f32.mrb[0].mxu0
    %v414 = vpop.f32.mrb[0].mxu0
    %v415 = vpop.f32.mrb[0].mxu0
    %416 = vdwg.mxu0
    %v417 = vmax.f32 %v412, 0.0
    %v418 = vpack.c.bf16 %v417, %v417
    %v419 = vld [vmem:[#allocation6] sm:$0xf]
    %v420 = vld [vmem:[#allocation6 + $0x4] sm:$0xf]
    %v421 = vld [vmem:[#allocation6 + $0x8] sm:$0xf]
    %v422 = vld [vmem:[#allocation6 + $0xc] sm:$0xf]
    %v423 = vld [vmem:[#allocation6 + $0x10] sm:$0xf]
    %v424 = vld [vmem:[#allocation6 + $0x14] sm:$0xf]
    %v425 = vld [vmem:[#allocation6 + $0x18] sm:$0xf]
    %v426 = vld [vmem:[#allocation6 + $0x1c] sm:$0xf]
    %v427 = vld [vmem:[#allocation6 + $0x20] sm:$0xf]
    %v428 = vld [vmem:[#allocation6 + $0x24] sm:$0xf]
    %v429 = vld [vmem:[#allocation6 + $0x28] sm:$0xf]
    %v430 = vld [vmem:[#allocation6 + $0x2c] sm:$0xf]
    %v431 = vld [vmem:[#allocation6 + $0x30] sm:$0xf]
    %v432 = vld [vmem:[#allocation6 + $0x34] sm:$0xf]
    %v433 = vld [vmem:[#allocation6 + $0x38] sm:$0xf]
    %v434 = vld [vmem:[#allocation6 + $0x3c] sm:$0xf]
    %v435 = vld [vmem:[%s6] sm:$0x1]
    %v437 = vlaneseq
    %v438 = vshrl.u32 %v437, 7
    %v439 = vsub.s32 0, %v438
    %v440 = vrot.slane %v435, %v439
    %v458 = vunpack.c.l.b16 %v419
    %v459 = vunpack.c.l.b16 %v420
    %v460 = vunpack.c.l.b16 %v421
    %v461 = vunpack.c.l.b16 %v422
    %v462 = vunpack.c.l.b16 %v423
    %v463 = vunpack.c.l.b16 %v424
    %v464 = vunpack.c.l.b16 %v425
    %v465 = vunpack.c.l.b16 %v426
    %v466 = vunpack.c.l.b16 %v427
    %v467 = vunpack.c.l.b16 %v428
    %v468 = vunpack.c.l.b16 %v429
    %v469 = vunpack.c.l.b16 %v430
    %v470 = vunpack.c.l.b16 %v431
    %v471 = vunpack.c.l.b16 %v432
    %v472 = vunpack.c.l.b16 %v433
    %v473 = vunpack.c.l.b16 %v434
    %v474 = vpack.c.b16 %v459, %v458
    %v475 = vpack.c.b16 %v461, %v460
    %v476 = vpack.c.b16 %v463, %v462
    %v477 = vpack.c.b16 %v465, %v464
    %v478 = vpack.c.b16 %v467, %v466
    %v479 = vpack.c.b16 %v469, %v468
    %v480 = vpack.c.b16 %v471, %v470
    %v481 = vpack.c.b16 %v473, %v472
    %490 = vmatprep.subr.bf16.mxu0 0
    %491 = vmatpush1.bf16.msra.mxu0 %v474
    %492 = vmatprep.subr.bf16.mxu0 0
    %493 = vmatpush1.bf16.msra.mxu0 %v475
    %494 = vmatprep.subr.bf16.mxu0 0
    %495 = vmatpush1.bf16.msra.mxu0 %v476
    %496 = vmatprep.subr.bf16.mxu0 0
    %497 = vmatpush1.bf16.msra.mxu0 %v477
    %498 = vmatprep.subr.bf16.mxu0 0
    %499 = vmatpush1.bf16.msra.mxu0 %v478
    %500 = vmatprep.subr.bf16.mxu0 0
    %501 = vmatpush1.bf16.msra.mxu0 %v479
    %502 = vmatprep.subr.bf16.mxu0 0
    %503 = vmatpush1.bf16.msra.mxu0 %v480
    %504 = vmatprep.subr.bf16.mxu0 0
    %505 = vmatpush1.bf16.msra.mxu0 %v481
    %506 = vmatprep.subr.bf16.mxu0 0
    %507 = vmatpush1.bf16.msra.mxu0 0
    %508 = vmatprep.subr.bf16.mxu0 0
    %509 = vmatpush1.bf16.msra.mxu0 0
    %510 = vmatprep.subr.bf16.mxu0 0
    %511 = vmatpush1.bf16.msra.mxu0 0
    %512 = vmatprep.subr.bf16.mxu0 0
    %513 = vmatpush1.bf16.msra.mxu0 0
    %514 = vmatprep.subr.bf16.mxu0 0
    %515 = vmatpush1.bf16.msra.mxu0 0
    %516 = vmatprep.subr.bf16.mxu0 0
    %517 = vmatpush1.bf16.msra.mxu0 0
    %518 = vmatprep.subr.bf16.mxu0 0
    %519 = vmatpush1.bf16.msra.mxu0 0
    %520 = vmatprep.subr.bf16.mxu0 0
    %521 = vmatpush1.bf16.msra.mxu0 0
    %522 = vmatprep.mubr.bf16.mxu0 0
    %523 = vmatmul.mubr.bf16.gmra.mrb[0].mxu0 %v418
    %v524 = vpop.f32.mrb[0].mxu0
    %v525 = vadd.f32 %v440, %v524
    %v526 = vpop.f32.mrb[0].mxu0
    %v527 = vpop.f32.mrb[0].mxu0
    %v528 = vpop.f32.mrb[0].mxu0
    %529 = vdwg.mxu0
    %v530 = vmax.f32 %v525, 0.0
    %v531 = vpack.c.bf16 %v530, %v530
    %v532 = vld [vmem:[#allocation7] sm:$0xf]
    %v533 = vld [vmem:[#allocation7 + $0x4] sm:$0xf]
    %v534 = vld [vmem:[#allocation7 + $0x8] sm:$0xf]
    %v535 = vld [vmem:[#allocation7 + $0xc] sm:$0xf]
    %v536 = vld [vmem:[#allocation7 + $0x10] sm:$0xf]
    %v537 = vld [vmem:[#allocation7 + $0x14] sm:$0xf]
    %v538 = vld [vmem:[#allocation7 + $0x18] sm:$0xf]
    %v539 = vld [vmem:[#allocation7 + $0x1c] sm:$0xf]
    %v540 = vld [vmem:[#allocation7 + $0x20] sm:$0xf]
    %v541 = vld [vmem:[#allocation7 + $0x24] sm:$0xf]
    %v542 = vld [vmem:[#allocation7 + $0x28] sm:$0xf]
    %v543 = vld [vmem:[#allocation7 + $0x2c] sm:$0xf]
    %v544 = vld [vmem:[#allocation7 + $0x30] sm:$0xf]
    %v545 = vld [vmem:[#allocation7 + $0x34] sm:$0xf]
    %v546 = vld [vmem:[#allocation7 + $0x38] sm:$0xf]
    %v547 = vld [vmem:[#allocation7 + $0x3c] sm:$0xf]
    %v548 = vld [vmem:[%s8] sm:$0x1]
    %v550 = vlaneseq
    %v551 = vshrl.u32 %v550, 7
    %v552 = vsub.s32 0, %v551
    %v553 = vrot.slane %v548, %v552
    %v571 = vunpack.c.l.b16 %v532
    %v572 = vunpack.c.l.b16 %v533
    %v573 = vunpack.c.l.b16 %v534
    %v574 = vunpack.c.l.b16 %v535
    %v575 = vunpack.c.l.b16 %v536
    %v576 = vunpack.c.l.b16 %v537
    %v577 = vunpack.c.l.b16 %v538
    %v578 = vunpack.c.l.b16 %v539
    %v579 = vunpack.c.l.b16 %v540
    %v580 = vunpack.c.l.b16 %v541
    %v581 = vunpack.c.l.b16 %v542
    %v582 = vunpack.c.l.b16 %v543
    %v583 = vunpack.c.l.b16 %v544
    %v584 = vunpack.c.l.b16 %v545
    %v585 = vunpack.c.l.b16 %v546
    %v586 = vunpack.c.l.b16 %v547
    %v587 = vpack.c.b16 %v572, %v571
    %v588 = vpack.c.b16 %v574, %v573
    %v589 = vpack.c.b16 %v576, %v575
    %v590 = vpack.c.b16 %v578, %v577
    %v591 = vpack.c.b16 %v580, %v579
    %v592 = vpack.c.b16 %v582, %v581
    %v593 = vpack.c.b16 %v584, %v583
    %v594 = vpack.c.b16 %v586, %v585
    %603 = vmatprep.subr.bf16.mxu0 0
    %604 = vmatpush1.bf16.msra.mxu0 %v587
    %605 = vmatprep.subr.bf16.mxu0 0
    %606 = vmatpush1.bf16.msra.mxu0 %v588
    %607 = vmatprep.subr.bf16.mxu0 0
    %608 = vmatpush1.bf16.msra.mxu0 %v589
    %609 = vmatprep.subr.bf16.mxu0 0
    %610 = vmatpush1.bf16.msra.mxu0 %v590
    %611 = vmatprep.subr.bf16.mxu0 0
    %612 = vmatpush1.bf16.msra.mxu0 %v591
    %613 = vmatprep.subr.bf16.mxu0 0
    %614 = vmatpush1.bf16.msra.mxu0 %v592
    %615 = vmatprep.subr.bf16.mxu0 0
    %616 = vmatpush1.bf16.msra.mxu0 %v593
    %617 = vmatprep.subr.bf16.mxu0 0
    %618 = vmatpush1.bf16.msra.mxu0 %v594
    %619 = vmatprep.subr.bf16.mxu0 0
    %620 = vmatpush1.bf16.msra.mxu0 0
    %621 = vmatprep.subr.bf16.mxu0 0
    %622 = vmatpush1.bf16.msra.mxu0 0
    %623 = vmatprep.subr.bf16.mxu0 0
    %624 = vmatpush1.bf16.msra.mxu0 0
    %625 = vmatprep.subr.bf16.mxu0 0
    %626 = vmatpush1.bf16.msra.mxu0 0
    %627 = vmatprep.subr.bf16.mxu0 0
    %628 = vmatpush1.bf16.msra.mxu0 0
    %629 = vmatprep.subr.bf16.mxu0 0
    %630 = vmatpush1.bf16.msra.mxu0 0
    %631 = vmatprep.subr.bf16.mxu0 0
    %632 = vmatpush1.bf16.msra.mxu0 0
    %633 = vmatprep.subr.bf16.mxu0 0
    %634 = vmatpush1.bf16.msra.mxu0 0
    %635 = vmatprep.mubr.bf16.mxu0 0
    %636 = vmatmul.mubr.bf16.gmra.mrb[0].mxu0 %v531
    %v637 = vpop.f32.mrb[0].mxu0
    %v638 = vadd.f32 %v553, %v637
    %v639 = vpop.f32.mrb[0].mxu0
    %v640 = vpop.f32.mrb[0].mxu0
    %v641 = vpop.f32.mrb[0].mxu0
    %642 = vdwg.mxu0
    %v643 = vpack.c.bf16 %v638, %v638
    %644 = vst [vmem:[%s9] sm:$0xf] %v643
    // Predicated region
    $region54: #{multi_model_head.1} parent=1 // pred_check
      _
    $region55: #{multi_model_head.1} parent=1 // pred_check_branch
      %646 = sbr.rel (0) target = $region57
    $region56: #{multi_model_head.1} parent=1 // pred_region
      _
    $region57: #{multi_model_head.1} parent=1 // pred_fallthru
      _
    // Predicated region
    $region58: #{multi_model_head.1} parent=1 // pred_check
      _
    $region59: #{multi_model_head.1} parent=1 // pred_check_branch
      %648 = sbr.rel (0) target = $region61
    $region60: #{multi_model_head.1} parent=1 // pred_region
      _
    $region61: #{multi_model_head.1} parent=1 // pred_fallthru
      _
    %649 = vsyncpa [#allocation3], 1
    %650 = vsyncpa [#allocation5], 1
    %651 = vsyncpa [#allocation8], 1

</llo_original>
